<compile_context>
chip_gen: v5e
topology: v5e:2x2
jax: 0.10.0
libtpu: 0.0.40
codegen_flags: <defaults>
</compile_context>

<pallas_src>
import jax
import jax.numpy as jnp
from jax.experimental import pallas as pl
from jax.experimental.pallas import tpu as pltpu

_LANE = 128


def _ce_kernel(x_ref, y_ref, o_ref, acc_ref):
    r = pl.program_id(1)

    @pl.when(r == 0)
    def _():
        acc_ref[...] = jnp.zeros_like(acc_ref)

    x = x_ref[...].astype(jnp.float32)          # (1, C, TR, 128)
    y = y_ref[...]                              # (1, TR, 128) int32 (-1 = padding)
    C = x.shape[1]

    # log-softmax over channels: C-1 elementwise maxes/adds over full (TR,128) vregs
    m = jnp.max(x, axis=1)                      # (1, TR, 128)
    xs = x - m[:, None, :, :]                   # (1, C, TR, 128)
    s = jnp.sum(jnp.exp(xs), axis=1)            # (1, TR, 128)
    lse = jnp.log(s)                            # (1, TR, 128)  -- N logs, not C*N

    # gather the target-channel logit via compare/select over the static channel count
    sel = jnp.zeros_like(lse)
    valid = jnp.zeros_like(lse)
    for c in range(C):                          # C is small & static -> unrolled VPU ops
        hit = (y == c)
        sel = sel + jnp.where(hit, xs[:, c, :, :], 0.0)
        valid = valid + hit.astype(jnp.float32)

    # per-pixel CE contribution; padded pixels (label -1) contribute exactly 0
    acc_ref[...] += sel - valid * lse

    # finalize: reduce the vreg-shaped accumulator to a per-batch scalar only once
    @pl.when(r == pl.num_programs(1) - 1)
    def _():
        o_ref[...] = jnp.sum(acc_ref[...], keepdims=True)


def _pick_tiles(N, C):
    """Return (TR, R_pad): rows-of-128 tile size and padded row count."""
    R = -(-N // _LANE)                          # number of 128-lane rows
    bytes_per_row = C * _LANE * 4               # one (C, 1, 128) f32 slab
    tr = max(8, min(512, (2 * 1024 * 1024) // bytes_per_row))   # ~<=2 MiB x-tile
    tr = (tr // 8) * 8                          # keep sublane tiling aligned
    if R <= tr:
        return R, R                             # single spatial tile (block == full dim)
    r_pad = -(-R // tr) * tr
    return tr, r_pad


def ce_loss(x, y_):
    """CELoss.forward: -mean over (B, H, W) of sum_c onehot(y_)*log(softmax(x)+1e-15)."""
    B, C, H, W = x.shape
    N = H * W
    x_flat = x.reshape(B, C, N)
    y_flat = y_.reshape(B, N).astype(jnp.int32)

    TR, R_pad = _pick_tiles(N, C)
    N_pad = R_pad * _LANE
    if N_pad != N:
        x_flat = jnp.pad(x_flat, ((0, 0), (0, 0), (0, N_pad - N)))
        y_flat = jnp.pad(y_flat, ((0, 0), (0, N_pad - N)), constant_values=-1)

    x4 = x_flat.reshape(B, C, R_pad, _LANE)
    y3 = y_flat.reshape(B, R_pad, _LANE)

    grid = (B, R_pad // TR)
    partials = pl.pallas_call(
        _ce_kernel,
        out_shape=jax.ShapeDtypeStruct((B, 1, 1), jnp.float32),
        grid_spec=pltpu.PrefetchScalarGridSpec(
            num_scalar_prefetch=0,
            grid=grid,
            in_specs=[
                pl.BlockSpec((1, C, TR, _LANE), lambda b, r: (b, 0, r, 0)),
                pl.BlockSpec((1, TR, _LANE), lambda b, r: (b, r, 0)),
            ],
            out_specs=pl.BlockSpec((1, 1, 1), lambda b, r: (b, 0, 0)),
            scratch_shapes=[pltpu.VMEM((1, TR, _LANE), jnp.float32)],
        ),
        compiler_params=pltpu.CompilerParams(
            dimension_semantics=("parallel", "arbitrary"),
        ),
    )(x4, y3)

    return -jnp.sum(partials) / (B * N)


# ----------------------------------------------------------------------------- #
# Pure-JAX reference (literal spec math) for a sanity check
# ----------------------------------------------------------------------------- #
def _reference_ce(x, y_):
    B, C, H, W = x.shape
    p = jax.nn.softmax(x.astype(jnp.float32), axis=1)
    onehot = (y_.astype(jnp.int32) ==
              jnp.arange(C, dtype=jnp.int32).reshape(1, C, 1, 1)).astype(jnp.float32)
    ce = jnp.sum(onehot * jnp.log(p + 1e-15), axis=1)   # (B, H, W)
    return -jnp.mean(ce)


if __name__ == "__main__":
    key = jax.random.PRNGKey(0)
    kx, ky = jax.random.split(key)

    B, C, H, W = 2, 4, 16, 16
    x = jax.random.normal(kx, (B, C, H, W), dtype=jnp.float32)
    y_ = jax.random.randint(ky, (B, 1, H, W), 0, C, dtype=jnp.int32)

    loss = jax.block_until_ready(ce_loss(x, y_))
    ref = jax.block_until_ready(_reference_ce(x, y_))
    assert jnp.allclose(loss, ref, rtol=1e-5, atol=1e-6), (loss, ref)

    print("KERNEL_OK")
</pallas_src>

<mosaic_0001>
module attributes {stable_mosaic.version = 11 : i64} {
  func.func @_ce_kernel(%arg0: i32, %arg1: i32, %arg2: memref<1x4x2x128xf32, #tpu.memory_space<vmem>>, %arg3: memref<1x2x128xi32, #tpu.memory_space<vmem>>, %arg4: memref<1x1x1xf32, #tpu.memory_space<vmem>>, %arg5: memref<1x2x128xf32, #tpu.memory_space<vmem>>) attributes {dimension_semantics = [#tpu.dimension_semantics<parallel>, #tpu.dimension_semantics<arbitrary>], iteration_bounds = array<i64: 2, 1>, scalar_prefetch = 0 : i64, scratch_operands = 1 : i64, tpu.core_type = #tpu.core_type<tc>, window_params = [{transform_indices = @transform_0, window_bounds = array<i64: 1, 4, 2, 128>}, {transform_indices = @transform_1, window_bounds = array<i64: 1, 2, 128>}, {transform_indices = @transform_2, window_bounds = array<i64: 1, 1, 1>}]} {
    %c0_i32 = arith.constant 0 : i32
    %0 = arith.cmpi eq, %arg1, %c0_i32 : i32
    %1 = arith.extui %0 : i1 to i32
    %c0_i32_0 = arith.constant 0 : i32
    %2 = arith.cmpi ne, %1, %c0_i32_0 : i32
    scf.if %2 {
      %cst_23 = arith.constant 0.000000e+00 : f32
      %62 = vector.broadcast %cst_23 : f32 to vector<1x2x128xf32>
      %c0_24 = arith.constant 0 : index
      %c0_25 = arith.constant 0 : index
      %c0_26 = arith.constant 0 : index
      %63 = vector.load %arg5[%c0_24, %c0_25, %c0_26] : memref<1x2x128xf32, #tpu.memory_space<vmem>>, vector<1x2x128xf32>
      tpu.vector_store %arg5[%c0_24, %c0_25, %c0_26], %62 {strides = array<i32>} : memref<1x2x128xf32, #tpu.memory_space<vmem>>, vector<1x2x128xf32>,
    } else {
    }
    %c0 = arith.constant 0 : index
    %c0_1 = arith.constant 0 : index
    %c0_2 = arith.constant 0 : index
    %c0_3 = arith.constant 0 : index
    %3 = vector.load %arg2[%c0, %c0_1, %c0_2, %c0_3] : memref<1x4x2x128xf32, #tpu.memory_space<vmem>>, vector<1x4x2x128xf32>
    %c0_4 = arith.constant 0 : index
    %c0_5 = arith.constant 0 : index
    %c0_6 = arith.constant 0 : index
    %4 = vector.load %arg3[%c0_4, %c0_5, %c0_6] : memref<1x2x128xi32, #tpu.memory_space<vmem>>, vector<1x2x128xi32>
    %cst = arith.constant dense<0xFF800000> : vector<1x2x128xf32>
    %5 = vector.multi_reduction <maximumf>, %3, %cst [1] : vector<1x4x2x128xf32> to vector<1x2x128xf32>
    %6 = vector.shape_cast %5 : vector<1x2x128xf32> to vector<1x1x2x128xf32>
    %7 = vector.broadcast %6 : vector<1x1x2x128xf32> to vector<1x4x2x128xf32>
    %8 = arith.subf %3, %7 : vector<1x4x2x128xf32>
    %9 = math.exp %8 : vector<1x4x2x128xf32>
    %cst_7 = arith.constant dense<0.000000e+00> : vector<1x2x128xf32>
    %10 = vector.multi_reduction <add>, %9, %cst_7 [1] : vector<1x4x2x128xf32> to vector<1x2x128xf32>
    %11 = math.log %10 : vector<1x2x128xf32>
    %cst_8 = arith.constant 0.000000e+00 : f32
    %12 = vector.broadcast %cst_8 : f32 to vector<1x2x128xf32>
    %cst_9 = arith.constant 0.000000e+00 : f32
    %13 = vector.broadcast %cst_9 : f32 to vector<1x2x128xf32>
    %c0_i32_10 = arith.constant 0 : i32
    %14 = vector.broadcast %c0_i32_10 : i32 to vector<1x2x128xi32>
    %15 = arith.cmpi eq, %4, %14 : vector<1x2x128xi32>
    %16 = vector.extract_strided_slice %8 {offsets = [0, 0, 0, 0], sizes = [1, 1, 2, 128], strides = [1, 1, 1, 1]} : vector<1x4x2x128xf32> to vector<1x1x2x128xf32>
    %17 = vector.shape_cast %16 : vector<1x1x2x128xf32> to vector<1x2x128xf32>
    %cst_11 = arith.constant 0.000000e+00 : f32
    %18 = vector.broadcast %cst_11 : f32 to vector<1x2x128xf32>
    %19 = arith.select %15, %17, %18 : vector<1x2x128xi1>, vector<1x2x128xf32>
    %20 = arith.addf %12, %19 : vector<1x2x128xf32>
    %21 = arith.extui %15 : vector<1x2x128xi1> to vector<1x2x128xi32>
    %22 = arith.sitofp %21 : vector<1x2x128xi32> to vector<1x2x128xf32>
    %23 = arith.addf %13, %22 : vector<1x2x128xf32>
    %c1_i32 = arith.constant 1 : i32
    %24 = vector.broadcast %c1_i32 : i32 to vector<1x2x128xi32>
    %25 = arith.cmpi eq, %4, %24 : vector<1x2x128xi32>
    %26 = vector.extract_strided_slice %8 {offsets = [0, 1, 0, 0], sizes = [1, 1, 2, 128], strides = [1, 1, 1, 1]} : vector<1x4x2x128xf32> to vector<1x1x2x128xf32>
    %27 = vector.shape_cast %26 : vector<1x1x2x128xf32> to vector<1x2x128xf32>
    %cst_12 = arith.constant 0.000000e+00 : f32
    %28 = vector.broadcast %cst_12 : f32 to vector<1x2x128xf32>
    %29 = arith.select %25, %27, %28 : vector<1x2x128xi1>, vector<1x2x128xf32>
    %30 = arith.addf %20, %29 : vector<1x2x128xf32>
    %31 = arith.extui %25 : vector<1x2x128xi1> to vector<1x2x128xi32>
    %32 = arith.sitofp %31 : vector<1x2x128xi32> to vector<1x2x128xf32>
    %33 = arith.addf %23, %32 : vector<1x2x128xf32>
    %c2_i32 = arith.constant 2 : i32
    %34 = vector.broadcast %c2_i32 : i32 to vector<1x2x128xi32>
    %35 = arith.cmpi eq, %4, %34 : vector<1x2x128xi32>
    %36 = vector.extract_strided_slice %8 {offsets = [0, 2, 0, 0], sizes = [1, 1, 2, 128], strides = [1, 1, 1, 1]} : vector<1x4x2x128xf32> to vector<1x1x2x128xf32>
    %37 = vector.shape_cast %36 : vector<1x1x2x128xf32> to vector<1x2x128xf32>
    %cst_13 = arith.constant 0.000000e+00 : f32
    %38 = vector.broadcast %cst_13 : f32 to vector<1x2x128xf32>
    %39 = arith.select %35, %37, %38 : vector<1x2x128xi1>, vector<1x2x128xf32>
    %40 = arith.addf %30, %39 : vector<1x2x128xf32>
    %41 = arith.extui %35 : vector<1x2x128xi1> to vector<1x2x128xi32>
    %42 = arith.sitofp %41 : vector<1x2x128xi32> to vector<1x2x128xf32>
    %43 = arith.addf %33, %42 : vector<1x2x128xf32>
    %c3_i32 = arith.constant 3 : i32
    %44 = vector.broadcast %c3_i32 : i32 to vector<1x2x128xi32>
    %45 = arith.cmpi eq, %4, %44 : vector<1x2x128xi32>
    %46 = vector.extract_strided_slice %8 {offsets = [0, 3, 0, 0], sizes = [1, 1, 2, 128], strides = [1, 1, 1, 1]} : vector<1x4x2x128xf32> to vector<1x1x2x128xf32>
    %47 = vector.shape_cast %46 : vector<1x1x2x128xf32> to vector<1x2x128xf32>
    %cst_14 = arith.constant 0.000000e+00 : f32
    %48 = vector.broadcast %cst_14 : f32 to vector<1x2x128xf32>
    %49 = arith.select %45, %47, %48 : vector<1x2x128xi1>, vector<1x2x128xf32>
    %50 = arith.addf %40, %49 : vector<1x2x128xf32>
    %51 = arith.extui %45 : vector<1x2x128xi1> to vector<1x2x128xi32>
    %52 = arith.sitofp %51 : vector<1x2x128xi32> to vector<1x2x128xf32>
    %53 = arith.addf %43, %52 : vector<1x2x128xf32>
    %c0_15 = arith.constant 0 : index
    %c0_16 = arith.constant 0 : index
    %c0_17 = arith.constant 0 : index
    %54 = vector.load %arg5[%c0_15, %c0_16, %c0_17] : memref<1x2x128xf32, #tpu.memory_space<vmem>>, vector<1x2x128xf32>
    %55 = arith.mulf %53, %11 : vector<1x2x128xf32>
    %56 = arith.subf %50, %55 : vector<1x2x128xf32>
    %57 = arith.addf %54, %56 : vector<1x2x128xf32>
    %c0_18 = arith.constant 0 : index
    %c0_19 = arith.constant 0 : index
    %c0_20 = arith.constant 0 : index
    %58 = vector.load %arg5[%c0_18, %c0_19, %c0_20] : memref<1x2x128xf32, #tpu.memory_space<vmem>>, vector<1x2x128xf32>
    tpu.vector_store %arg5[%c0_18, %c0_19, %c0_20], %57 {strides = array<i32>} : memref<1x2x128xf32, #tpu.memory_space<vmem>>, vector<1x2x128xf32>,
    %c0_i32_21 = arith.constant 0 : i32
    %59 = arith.cmpi eq, %arg1, %c0_i32_21 : i32
    %60 = arith.extui %59 : i1 to i32
    %c0_i32_22 = arith.constant 0 : i32
    %61 = arith.cmpi ne, %60, %c0_i32_22 : i32
    scf.if %61 {
      %c0_23 = arith.constant 0 : index
      %c0_24 = arith.constant 0 : index
      %c0_25 = arith.constant 0 : index
      %62 = vector.load %arg5[%c0_23, %c0_24, %c0_25] : memref<1x2x128xf32, #tpu.memory_space<vmem>>, vector<1x2x128xf32>
      %63 = vector.shape_cast %62 : vector<1x2x128xf32> to vector<1x1x2x128xf32>
      %cst_26 = arith.constant dense<0.000000e+00> : vector<1xf32>
      %64 = vector.multi_reduction <add>, %63, %cst_26 [1, 2, 3] : vector<1x1x2x128xf32> to vector<1xf32>
      %65 = vector.shape_cast %64 : vector<1xf32> to vector<1x1x1x1xf32>
      %66 = vector.extract %65[0, 0, 0, 0] : f32 from vector<1x1x1x1xf32>
      %67 = vector.broadcast %66 : f32 to vector<1x1x1xf32>
      %c0_27 = arith.constant 0 : index
      %c0_28 = arith.constant 0 : index
      %c0_29 = arith.constant 0 : index
      %68 = vector.load %arg4[%c0_27, %c0_28, %c0_29] : memref<1x1x1xf32, #tpu.memory_space<vmem>>, vector<1x1x1xf32>
      tpu.vector_store %arg4[%c0_27, %c0_28, %c0_29], %67 {strides = array<i32>} : memref<1x1x1xf32, #tpu.memory_space<vmem>>, vector<1x1x1xf32>,
    } else {
    }
    return
  }
  func.func @transform_0(%arg0: i32, %arg1: i32) -> (i32, i32, i32, i32) {
    %c0_i32 = arith.constant 0 : i32
    %c0_i32_0 = arith.constant 0 : i32
    %c0_i32_1 = arith.constant 0 : i32
    return %arg0, %c0_i32, %arg1, %c0_i32_0 : i32, i32, i32, i32
  }
  func.func @transform_1(%arg0: i32, %arg1: i32) -> (i32, i32, i32) {
    %c0_i32 = arith.constant 0 : i32
    %c0_i32_0 = arith.constant 0 : i32
    return %arg0, %arg1, %c0_i32 : i32, i32, i32
  }
  func.func @transform_2(%arg0: i32, %arg1: i32) -> (i32, i32, i32) {
    %c0_i32 = arith.constant 0 : i32
    %c0_i32_0 = arith.constant 0 : i32
    %c0_i32_1 = arith.constant 0 : i32
    return %arg0, %c0_i32, %c0_i32_0 : i32, i32, i32
  }
}

</mosaic_0001>

<llo_original>
// kernel: tpu_custom_call.1
$region0: #{tpu_custom_call.1}
  #allocation0 [shape = 'u32[]', space=smem, size = 0x4, offset = 0x4, fixed_abs, tag = 'smem constant byte address 0x4 - core index']
  #allocation1 [shape = 'u32[72,128]{1,0:T(1,128)}', space=vmem, size = 0x9000, scoped, tag = 'internal scratch']
  #allocation2 [shape = 'f32[1,2,128]{2,1,0:T(2,128)}', space=vmem, size = 0x400, scoped, tag = 'scratch operand']
  %s0 = inlined_call_operand.hbm [shape: f32[2,4,2,128], index: 0, kind: input, shape index: {}]
  %s1 = inlined_call_operand.hbm [shape: s32[2,2,128], index: 1, kind: input, shape index: {}]
  %s2 = inlined_call_operand.vmem [shape: f32[2,1,1], index: 2, kind: output, shape index: {}]
  %s3 = sld [smem:[#allocation0]]
  $region57: #{tpu_custom_call.1} parent=0
    _
  %s5 = ssub.s32 1, %s3
  %s6 = scalar_select 0, %s5, %s3
  $region1: #{tpu_custom_call.1} parent=0
    #allocation3 [shape = 'u8[8192]{0}', space=vmem, size = 0x2000, scoped, tag = 'input window, operand 0']
    #allocation4 [shape = 's32[2]{0}', space=sflag, size = 0x8, scoped, tag = 'scoped memory for tpu_custom_call.1']
    #allocation5 [shape = 'u8[2048]{0}', space=vmem, size = 0x800, scoped, tag = 'input window, operand 1']
    #allocation6 [shape = 's32[2]{0}', space=sflag, size = 0x8, scoped, tag = 'scoped memory for tpu_custom_call.1']
    %7 = vsyncpa [#allocation4], 0
    %s8 = scalar_lea.sflag [#allocation4], 1
    %9 = vsyncpa %s8, 0
    %10 = vsyncpa [#allocation6], 0
    %s11 = scalar_lea.sflag [#allocation6], 1
    %12 = vsyncpa %s11, 0
    loop: start=0, step=1, limit=4
    $region2: #{tpu_custom_call.1} parent=1 // loop_pre_header
      _
    $region3: #{tpu_custom_call.1} parent=1 // loop_header
      %s14 = sphi 0, %s18
      %p15 = scmp.ge.s32.totalorder %s14, 4
      %s21 = sphi 0, %s33
      %s22 = sphi 0, %s29
      %s23 = sphi 0, %s21
      %s24 = sphi 0, %s22
      %s25 = sphi 0, %s23
      %s26 = sphi 0, %s24
      %s38 = sphi 0, %s40
      %s41 = sphi 0, %s38
      %s42 = sphi 0, %s41
      %s58 = sphi 0, %s42
      %s66 = sphi 0, %s68
      %s69 = sphi 0, %s66
      %s70 = sphi 0, %s69
      %s86 = sphi 0, %s70
      %s92 = sphi 0, %s94
      %s95 = sphi 0, %s92
      %s96 = sphi 0, %s95
      %s112 = sphi 0, %s96
    $region4: #{tpu_custom_call.1} parent=1 // loop_header_branch
      %17 = sbr.rel (%p15) target = $region8
    $region5: #{tpu_custom_call.1} parent=1 // loop_body
      %s19 = ssub.s32 %s14, 1
      %s20 = ssub.s32 %s14, 2
      %s27 = sadd.s32 1, %s22
      %p28 = scmp.ge.s32.totalorder %s27, 1
      %s29 = scalar_select %p28, 0, %s27
      %s30 = sadd.s32 1, %s21
      %s31 = scalar_select %p28, %s30, %s21
      %p32 = scmp.ge.s32.totalorder %s31, 2
      %s33 = scalar_select %p32, 0, %s31
      %s34 = ssub.s32 %s21, %s33
      %s35 = ssub.s32 %s22, %s29
      %s36 = sor.u32 %s34, %s35
      %p37 = scmp.eq.s32.totalorder %s36, 0
      %s39 = sadd.s32 %s38, 1
      %s40 = scalar_select %p37, %s38, %s39
      %p43 = pneg %p37
      %p44 = scmp.eq.s32.totalorder %s14, 1
      %p45 = por %p43, %p44
      %p46 = scmp.ne.s32.totalorder %s38, %s41
      %p47 = scmp.eq.s32.totalorder %s14, 0
      %p48 = por %p46, %p47
      %p49 = scmp.ne.s32.totalorder %s38, %s41
      %p50 = scmp.eq.s32.totalorder %s19, 1
      %p51 = por %p49, %p50
      %p52 = scmp.ne.s32.totalorder %s41, %s42
      %p53 = scmp.eq.s32.totalorder %s19, 0
      %p54 = por %p52, %p53
      %p55 = scmp.ne.s32.totalorder %s41, %s42
      %p56 = scmp.eq.s32.totalorder %s20, 1
      %p57 = por %p55, %p56
      %p59 = scmp.ne.s32.totalorder %s42, %s58
      %p60 = scmp.eq.s32.totalorder %s20, 0
      %p61 = por %p59, %p60
      %s62 = ssub.s32 %s21, %s33
      %s63 = ssub.s32 %s22, %s29
      %s64 = sor.u32 %s62, %s63
      %p65 = scmp.eq.s32.totalorder %s64, 0
      %s67 = sadd.s32 %s66, 1
      %s68 = scalar_select %p65, %s66, %s67
      %p71 = pneg %p65
      %p72 = scmp.eq.s32.totalorder %s14, 1
      %p73 = por %p71, %p72
      %p74 = scmp.ne.s32.totalorder %s66, %s69
      %p75 = scmp.eq.s32.totalorder %s14, 0
      %p76 = por %p74, %p75
      %p77 = scmp.ne.s32.totalorder %s66, %s69
      %p78 = scmp.eq.s32.totalorder %s19, 1
      %p79 = por %p77, %p78
      %p80 = scmp.ne.s32.totalorder %s69, %s70
      %p81 = scmp.eq.s32.totalorder %s19, 0
      %p82 = por %p80, %p81
      %p83 = scmp.ne.s32.totalorder %s69, %s70
      %p84 = scmp.eq.s32.totalorder %s20, 1
      %p85 = por %p83, %p84
      %p87 = scmp.ne.s32.totalorder %s70, %s86
      %p88 = scmp.eq.s32.totalorder %s20, 0
      %p89 = por %p87, %p88
      %s90 = ssub.s32 %s21, %s33
      %p91 = scmp.eq.s32.totalorder %s90, 0
      %s93 = sadd.s32 %s92, 1
      %s94 = scalar_select %p91, %s92, %s93
      %p97 = pneg %p91
      %p98 = scmp.eq.s32.totalorder %s14, 1
      %p99 = por %p97, %p98
      %p100 = scmp.ne.s32.totalorder %s92, %s95
      %p101 = scmp.eq.s32.totalorder %s14, 0
      %p102 = por %p100, %p101
      %p103 = scmp.ne.s32.totalorder %s92, %s95
      %p104 = scmp.eq.s32.totalorder %s19, 1
      %p105 = por %p103, %p104
      %p106 = scmp.ne.s32.totalorder %s95, %s96
      %p107 = scmp.eq.s32.totalorder %s19, 0
      %p108 = por %p106, %p107
      %p109 = scmp.ne.s32.totalorder %s95, %s96
      %p110 = scmp.eq.s32.totalorder %s20, 1
      %p111 = por %p109, %p110
      %p113 = scmp.ne.s32.totalorder %s96, %s112
      %p114 = scmp.eq.s32.totalorder %s20, 0
      %p115 = por %p113, %p114
      %p116 = scmp.le.s32.totalorder 1, %s14
      %p117 = scmp.lt.s32.totalorder %s14, 3
      %p118 = pnand %p116, %p117
      %p119 = pneg %p118
      // Predicated region
      $region9: #{tpu_custom_call.1} parent=5 // pred_check
        _
      $region10: #{tpu_custom_call.1} parent=5 // pred_check_branch
        %121 = sbr.rel (%p118) target = $region12
      $region11: #{tpu_custom_call.1} parent=5 // pred_region
        %s122 = ssub.s32 %s14, 1
      $region12: #{tpu_custom_call.1} parent=5 // pred_fallthru
        _
      %p123 = scmp.lt.s32.totalorder %s14, 2
      // Predicated region
      $region13: #{tpu_custom_call.1} parent=5 // pred_check
        %p124 = pneg %p123
      $region14: #{tpu_custom_call.1} parent=5 // pred_check_branch
        %126 = sbr.rel (%p124) target = $region16
      $region15: #{tpu_custom_call.1} parent=5 // pred_region
        // Predicated region
        $region17: #{tpu_custom_call.1} parent=15 // pred_check
          %p127 = pneg %p48
        $region18: #{tpu_custom_call.1} parent=15 // pred_check_branch
          %129 = sbr.rel (%p127) target = $region20
        $region19: #{tpu_custom_call.1} parent=15 // pred_region
          %s130 = sand.u32 %s38, 1
          %s131 = scalar_lea.sflag [#allocation4], %s130
          %s132 = sand.u32 %s38, 1
          %s133 = smul.addr %s132, 8
          %s134 = scalar_lea.vmem [#allocation3], %s133
          %136 = vsyncadd %s131, 0
          %s137 = smul.addr %s21, 4
          %s138 = sadd.s32 %s22, %s137
          %s139 = smul.addr %s138, 2
          %s140 = scalar_lea.hbm %s0, %s139
          %s141 = sshll.u32 %s140, 4
          %s142 = int_to_ptr.hbm [resolvable:$true] %s141
          %s143 = sshll.u32 %s134, 4
          %s144 = int_to_ptr.vmem [resolvable:$true] %s143
          %149 = dma.hbm_to_vmem [thread:$0]  %s142, 128, %s144, %s131, 32, 32, 2
        $region20: #{tpu_custom_call.1} parent=15 // pred_fallthru
          _
        // Predicated region
        $region21: #{tpu_custom_call.1} parent=15 // pred_check
          %p150 = pneg %p76
        $region22: #{tpu_custom_call.1} parent=15 // pred_check_branch
          %152 = sbr.rel (%p150) target = $region24
        $region23: #{tpu_custom_call.1} parent=15 // pred_region
          %s153 = sand.u32 %s66, 1
          %s154 = scalar_lea.sflag [#allocation6], %s153
          %s155 = sand.u32 %s66, 1
          %s156 = smul.addr %s155, 2
          %s157 = scalar_lea.vmem [#allocation5], %s156
          %159 = vsyncadd %s154, 0
          %s160 = sadd.s32 %s22, %s21
          %s161 = smul.addr %s160, 2
          %s162 = scalar_lea.hbm %s1, %s161
          %s164 = sshll.u32 %s162, 4
          %s165 = int_to_ptr.hbm [resolvable:$true] %s164
          %s166 = sshll.u32 %s157, 4
          %s167 = int_to_ptr.vmem [resolvable:$true] %s166
          %169 = dma.hbm_to_vmem [thread:$0]  %s165, 32, %s167, %s154
        $region24: #{tpu_custom_call.1} parent=15 // pred_fallthru
          _
      $region16: #{tpu_custom_call.1} parent=5 // pred_fallthru
        _
      %p170 = scmp.le.s32.totalorder 1, %s14
      %p171 = scmp.lt.s32.totalorder %s14, 3
      %p172 = pnand %p170, %p171
      %p173 = pneg %p172
      // Predicated region
      $region25: #{tpu_custom_call.1} parent=5 // pred_check
        _
      $region26: #{tpu_custom_call.1} parent=5 // pred_check_branch
        %175 = sbr.rel (%p172) target = $region28
      $region27: #{tpu_custom_call.1} parent=5 // pred_region
        %s176 = ssub.s32 %s14, 1
        %s177 = sand.u32 %s41, 1
        %s178 = scalar_lea.sflag [#allocation4], %s177
        %s179 = sand.u32 %s41, 1
        %s180 = smul.addr %s179, 8
        %s181 = scalar_lea.vmem [#allocation3], %s180
        // Predicated region
        $region29: #{tpu_custom_call.1} parent=27 // pred_check
          %p182 = pneg %p54
        $region30: #{tpu_custom_call.1} parent=27 // pred_check_branch
          %184 = sbr.rel (%p182) target = $region32
        $region31: #{tpu_custom_call.1} parent=27 // pred_region
          %186 = dma.done %s178, 128
        $region32: #{tpu_custom_call.1} parent=27 // pred_fallthru
          _
        %s187 = sand.u32 %s69, 1
        %s188 = scalar_lea.sflag [#allocation6], %s187
        %s189 = sand.u32 %s69, 1
        %s190 = smul.addr %s189, 2
        %s191 = scalar_lea.vmem [#allocation5], %s190
        // Predicated region
        $region33: #{tpu_custom_call.1} parent=27 // pred_check
          %p192 = pneg %p82
        $region34: #{tpu_custom_call.1} parent=27 // pred_check_branch
          %194 = sbr.rel (%p192) target = $region36
        $region35: #{tpu_custom_call.1} parent=27 // pred_region
          %196 = dma.done %s188, 32
        $region36: #{tpu_custom_call.1} parent=27 // pred_fallthru
          _
        %s197 = sand.u32 %s41, 1
        %s198 = scalar_lea.sflag [#allocation4], %s197
        %s199 = sand.u32 %s41, 1
        %s200 = smul.addr %s199, 8
        %s201 = scalar_lea.vmem [#allocation3], %s200
        %p202 = pneg %p54
        %p203 = pneg %p51
        %s204 = sand.u32 %s69, 1
        %s205 = scalar_lea.sflag [#allocation6], %s204
        %s206 = sand.u32 %s69, 1
        %s207 = smul.addr %s206, 2
        %s208 = scalar_lea.vmem [#allocation5], %s207
        %p209 = pneg %p82
        %p210 = pneg %p79
        %p211 = pneg %p108
        %p212 = pneg %p105
        %p213 = scmp.lt.s32.totalorder %s23, 1
        %s214 = scalar_select %p213, %s23, 1
        %s215 = scalar_lea.vmem %s2, %s214
        %p216 = scmp.lt.s32.totalorder %s23, 1
        %s217 = scalar_select %p216, %s23, 1
        %s218 = scalar_lea.vmem %s2, %s217
        %p219 = scmp.eq.s32.totalorder %s24, 0
        // Predicated region
        $region37: #{tpu_custom_call.1} parent=27 // pred_check
          %p220 = pneg %p219
        $region38: #{tpu_custom_call.1} parent=27 // pred_check_branch
          %222 = sbr.rel (%p220) target = $region40
        $region39: #{tpu_custom_call.1} parent=27 // pred_region
          %223 = vst [vmem:[#allocation2] sm:$0x3] 0.0
        $region40: #{tpu_custom_call.1} parent=27 // pred_fallthru
          _
        %v224 = vld [vmem:[%s181] sm:$0x3]
        %v225 = vld [vmem:[%s181 + $0x2] sm:$0x3]
        %v226 = vld [vmem:[%s181 + $0x4] sm:$0x3]
        %v227 = vld [vmem:[%s181 + $0x6] sm:$0x3]
        %v228 = vld [vmem:[%s191] sm:$0x3]
        %vm229 = vcmask 1041408
        %v230 = vsel %vm229, %v224, -inf
        %v231 = vsel %vm229, %v225, -inf
        %v232 = vsel %vm229, %v226, -inf
        %v233 = vsel %vm229, %v227, -inf
        %v234 = vmax.f32 %v230, %v231
        %v235 = vmax.f32 %v232, %v233
        %v236 = vmax.f32 %v234, %v235
        %v237 = vsub.f32 %v224, %v236
        %v238 = vsub.f32 %v225, %v236
        %v239 = vsub.f32 %v226, %v236
        %v240 = vsub.f32 %v227, %v236
        %v241 = vmul.f32 %v237, 1.442695
        %v242 = vpow.pop %v241
        %v243 = vmul.f32 %v238, 1.442695
        %v244 = vpow.pop %v243
        %v245 = vmul.f32 %v239, 1.442695
        %v246 = vpow.pop %v245
        %v247 = vmul.f32 %v240, 1.442695
        %v248 = vpow.pop %v247
        %v249 = vsel %vm229, %v242, 0.0
        %v250 = vsel %vm229, %v244, 0.0
        %v251 = vadd.f32 %v249, %v250
        %v252 = vsel %vm229, %v246, 0.0
        %v253 = vadd.f32 %v251, %v252
        %v254 = vsel %vm229, %v248, 0.0
        %v255 = vadd.f32 %v253, %v254
        %v256 = vlog2.pop %v255
        %v257 = vmul.f32 %v256, 0.6931472
        %vm258 = vcmp.eq.s32.totalorder %v228, 0
        %v259 = vsel %vm258, %v237, 0.0
        %v260 = vadd.f32 %v259, 0.0
        %v261 = vsel %vm258, 1, 0
        %v262 = vcvt.s32.f32 %v261
        %v263 = vadd.f32 %v262, 0.0
        %vm264 = vcmp.eq.s32.totalorder %v228, 1
        %v265 = vsel %vm264, %v238, 0.0
        %v266 = vadd.f32 %v260, %v265
        %v267 = vsel %vm264, 1, 0
        %v268 = vcvt.s32.f32 %v267
        %v269 = vadd.f32 %v263, %v268
        %vm270 = vcmp.eq.s32.totalorder %v228, 2
        %v271 = vsel %vm270, %v239, 0.0
        %v272 = vadd.f32 %v266, %v271
        %v273 = vsel %vm270, 1, 0
        %v274 = vcvt.s32.f32 %v273
        %v275 = vadd.f32 %v269, %v274
        %vm276 = vcmp.eq.s32.totalorder %v228, 3
        %v277 = vsel %vm276, %v240, 0.0
        %v278 = vadd.f32 %v272, %v277
        %v279 = vsel %vm276, 1, 0
        %v280 = vcvt.s32.f32 %v279
        %v281 = vadd.f32 %v275, %v280
        %v282 = vld [vmem:[#allocation2] sm:$0x3]
        %v283 = vmul.f32 %v281, %v257
        %v284 = vsub.f32 %v278, %v283
        %v285 = vadd.f32 %v282, %v284
        %286 = vst [vmem:[#allocation2] sm:$0x3] %v285
        // Predicated region
        $region41: #{tpu_custom_call.1} parent=27 // pred_check
          %p287 = pneg %p219
        $region42: #{tpu_custom_call.1} parent=27 // pred_check_branch
          %289 = sbr.rel (%p287) target = $region44
        $region43: #{tpu_custom_call.1} parent=27 // pred_region
          %v290 = vld [vmem:[#allocation2] sm:$0x3]
          %v291 = vsel %vm229, %v290, 0.0
          %292 = vadd.xlane.f32.xlu0 %v291
          %v293 = vpop.xlane.xlu0 %292
          %v294 = vrot.slane %v293, 4
          %v295 = vadd.f32 %v293, %v294
          %v296 = vrot.slane %v295, 2
          %v297 = vadd.f32 %v295, %v296
          %v298 = vrot.slane %v297, 1
          %v299 = vadd.f32 %v297, %v298
          %s300 = vtos %v299
          %v301 = vstv %s300
          %vm302 = vcmask 0
          %303 = vst.msk [vmem:[%s218] sm:$0x1] %vm302, %v301
        $region44: #{tpu_custom_call.1} parent=27 // pred_fallthru
          _
        %p304 = scmp.lt.s32.totalorder %s23, 1
        %s305 = scalar_select %p304, %s23, 1
        %s306 = scalar_lea.vmem %s2, %s305
        // Predicated region
        $region45: #{tpu_custom_call.1} parent=27 // pred_check
          %p307 = pneg %p105
        $region46: #{tpu_custom_call.1} parent=27 // pred_check_branch
          %309 = sbr.rel (%p307) target = $region48
        $region47: #{tpu_custom_call.1} parent=27 // pred_region
          _
        $region48: #{tpu_custom_call.1} parent=27 // pred_fallthru
          _
      $region28: #{tpu_custom_call.1} parent=5 // pred_fallthru
        _
      %p310 = scmp.le.s32.totalorder 2, %s14
      // Predicated region
      $region49: #{tpu_custom_call.1} parent=5 // pred_check
        %p311 = pneg %p310
      $region50: #{tpu_custom_call.1} parent=5 // pred_check_branch
        %313 = sbr.rel (%p311) target = $region52
      $region51: #{tpu_custom_call.1} parent=5 // pred_region
        %s314 = ssub.s32 %s14, 2
        // Predicated region
        $region53: #{tpu_custom_call.1} parent=51 // pred_check
          %p315 = pneg %p111
        $region54: #{tpu_custom_call.1} parent=51 // pred_check_branch
          %317 = sbr.rel (%p315) target = $region56
        $region55: #{tpu_custom_call.1} parent=51 // pred_region
          %p318 = scmp.lt.s32.totalorder %s25, 1
          %s319 = scalar_select %p318, %s25, 1
          %s320 = scalar_lea.vmem %s2, %s319
        $region56: #{tpu_custom_call.1} parent=51 // pred_fallthru
          _
      $region52: #{tpu_custom_call.1} parent=5 // pred_fallthru
        _
    $region6: #{tpu_custom_call.1} parent=1 // loop_footer
      %s18 = sadd.s32 1, %s14
    $region7: #{tpu_custom_call.1} parent=1 // loop_footer_branch
      %13 = sbr.rel target = $region3
    $region8: #{tpu_custom_call.1} parent=1 // loop_exit
      _
    %321 = vsyncpa [#allocation4], 1
    %s322 = scalar_lea.sflag [#allocation4], 1
    %323 = vsyncpa %s322, 1
    %324 = vsyncpa [#allocation6], 1
    %s325 = scalar_lea.sflag [#allocation6], 1
    %326 = vsyncpa %s325, 1

</llo_original>
